<compile_context>
chip_gen: v5e
topology: v5e:2x2
jax: 0.10.0
libtpu: 0.0.40
codegen_flags: <defaults>
</compile_context>

<pallas_src>
import jax
import jax.numpy as jnp
from jax.experimental import pallas as pl
from jax.experimental.pallas import tpu as pltpu


# ----------------------------------------------------------------------------
# Chip-aware sizing helpers.
# ----------------------------------------------------------------------------
def _tpu_vmem_capacity():
    try:
        cap = int(pltpu.get_tpu_info().vmem_capacity_bytes)
        if cap > 0:
            return cap
    except Exception:
        pass
    return 128 * 1024 * 1024            # v5e / v6e default


def _vmem_limit_bytes(required):
    """Scoped-VMEM budget: never below the static block working set, ~2x it
    when there is headroom, capped at 75% of physical VMEM (safe on v7x's
    64 MiB as well as the 128 MiB chips)."""
    required = int(required)
    hi = _tpu_vmem_capacity() * 3 // 4
    want = max(2 * required, 16 * 1024 * 1024)
    return int(max(min(want, hi), required + (2 << 20)))


def _pick_tiles(n_pad, d_out):
    """Largest (tile_n, tile_k) -- multiples of 128 dividing n_pad -- whose
    aggregation working set fits ~40% of this chip's VMEM."""
    budget = int(_tpu_vmem_capacity() * 0.4)
    cands = [t for t in (1024, 512, 256, 128) if n_pad % t == 0]
    for tn in cands:
        for tk in cands:
            need = (2 * tn * tk                 # int8 A tile, double-buffered
                    + 2 * tk * d_out * 2        # bf16 M k-slab, double-buffered
                    + 4 * tn * d_out * 4        # f32 S + resident output
                    + 2 * tn * 4 + d_out * 4)   # deg_inv + bias
            if need <= budget:
                if (n_pad // tn) % 2 == 1 and tn > 128:
                    tn //= 2                    # even tile count -> 2 v7x TCs busy
                return tn, tk
    return 128, 128


# ----------------------------------------------------------------------------
# Kernel 1: weight transform.
#   One wide, lane-dense MXU matmul  Z = H @ [W_self | W_1 | ... | W_R]
#   then split on-chip:  S = Z[:, :D]  (f32),  M[r] = Z[:, (r+1)D:(r+2)D] (bf16)
# ----------------------------------------------------------------------------
def rgcn_transform_kernel(h_ref, w_ref, s_ref, m_ref):
    h = h_ref[...].astype(jnp.bfloat16)          # cast in-kernel: read f32 once
    z = jnp.dot(h, w_ref[...], preferred_element_type=jnp.float32)
    d_out = s_ref.shape[-1]
    s_ref[...] = z[:, :d_out]
    num_rels = m_ref.shape[0]
    for r in range(num_rels):                    # static unroll (R is small)
        m_ref[r] = z[:, (r + 1) * d_out:(r + 2) * d_out].astype(jnp.bfloat16)


def rgcn_transform(H, W_cat, *, num_rels, d_out, tile_n):
    N, D_in = H.shape
    w_cols = W_cat.shape[1]
    n_tiles = N // tile_n
    required = (2 * tile_n * D_in * 4            # f32 H tile, double-buffered
                + 2 * D_in * w_cols * 2          # bf16 W_cat resident
                + 2 * tile_n * d_out * 4         # f32 S tile
                + 2 * num_rels * tile_n * d_out * 2)  # bf16 M tile
    return pl.pallas_call(
        rgcn_transform_kernel,
        out_shape=(jax.ShapeDtypeStruct((N, d_out), jnp.float32),
                   jax.ShapeDtypeStruct((num_rels, N, d_out), jnp.bfloat16)),
        grid_spec=pltpu.PrefetchScalarGridSpec(
            num_scalar_prefetch=0,
            grid=(n_tiles,),
            in_specs=[
                pl.BlockSpec((tile_n, D_in), lambda i: (i, 0)),
                pl.BlockSpec((D_in, w_cols), lambda i: (0, 0)),
            ],
            out_specs=[
                pl.BlockSpec((tile_n, d_out), lambda i: (i, 0)),
                pl.BlockSpec((num_rels, tile_n, d_out), lambda i: (0, i, 0)),
            ],
        ),
        compiler_params=pltpu.CompilerParams(
            dimension_semantics=("parallel",),
            vmem_limit_bytes=_vmem_limit_bytes(required)),
    )(H, W_cat)


# ----------------------------------------------------------------------------
# Kernel 2: per-relation aggregation, K-tiled contraction.
#   out[i] = ReLU( S[i] + b + sum_r (1/deg_r[i]) * sum_k A01[r,i,k] @ M[r,k] )
# Grid (node_tiles, R, k_tiles): node axis "parallel" (megacore), relation and
# contraction axes "arbitrary" (reduction, trailing).  Output block is
# resident across (r, k).  A is int8 0/1 in HBM (half the dominant stream),
# cast to bf16 on-chip for the MXU; 1/deg scale + bias + ReLU stay f32 on VPU.
# ----------------------------------------------------------------------------
def rgcn_aggregate_kernel(a_ref, m_ref, s_ref, b_ref, dinv_ref, out_ref):
    r = pl.program_id(1)
    k = pl.program_id(2)

    @pl.when(jnp.logical_and(r == 0, k == 0))
    def _():
        out_ref[...] = s_ref[...] + b_ref[...]

    part = jnp.dot(a_ref[...].astype(jnp.bfloat16), m_ref[...],
                   preferred_element_type=jnp.float32)
    out_ref[...] += dinv_ref[...] * part

    @pl.when(jnp.logical_and(r == pl.num_programs(1) - 1,
                             k == pl.num_programs(2) - 1))
    def _():
        out_ref[...] = jnp.maximum(out_ref[...], 0.0)


def rgcn_aggregate(A_i8, M, S, bias, deg_inv, *, tile_n, tile_k):
    R, N, _ = A_i8.shape
    d_out = S.shape[1]
    n_tiles = N // tile_n
    k_tiles = N // tile_k
    required = (2 * tile_n * tile_k
                + 2 * tile_k * d_out * 2
                + 4 * tile_n * d_out * 4
                + 2 * tile_n * 4 + d_out * 4)
    return pl.pallas_call(
        rgcn_aggregate_kernel,
        out_shape=jax.ShapeDtypeStruct((N, d_out), jnp.float32),
        grid_spec=pltpu.PrefetchScalarGridSpec(
            num_scalar_prefetch=0,
            grid=(n_tiles, R, k_tiles),
            in_specs=[
                # A01: (R, N, N) int8 -> kernel sees (tile_n, tile_k)
                pl.BlockSpec((pl.Squeezed(), tile_n, tile_k),
                             lambda i, r, k: (r, i, k)),
                # M: (R, N, d_out) bf16 -> kernel sees (tile_k, d_out)
                pl.BlockSpec((pl.Squeezed(), tile_k, d_out),
                             lambda i, r, k: (r, k, 0)),
                # S: (N, d_out) f32 self-loop term (block index constant in r,k)
                pl.BlockSpec((tile_n, d_out), lambda i, r, k: (i, 0)),
                # bias: (1, d_out) f32
                pl.BlockSpec((1, d_out), lambda i, r, k: (0, 0)),
                # deg_inv: (R, N, 1) f32 -> kernel sees (tile_n, 1)
                pl.BlockSpec((pl.Squeezed(), tile_n, 1),
                             lambda i, r, k: (r, i, 0)),
            ],
            out_specs=pl.BlockSpec((tile_n, d_out), lambda i, r, k: (i, 0)),
        ),
        compiler_params=pltpu.CompilerParams(
            dimension_semantics=("parallel", "arbitrary", "arbitrary"),
            vmem_limit_bytes=_vmem_limit_bytes(required)),
    )(A_i8, M, S, bias, deg_inv)


# ----------------------------------------------------------------------------
# Kernel 3: batched row gather  repr_layer[node_ids]  (mlp_update).
# node_ids are scalar-prefetched into SMEM; each grid step issues GROUP manual
# HBM->VMEM row DMAs and one unmasked (GROUP, D) store.
# ----------------------------------------------------------------------------
_GATHER_GROUP = 8


def gather_kernel(ids_ref, src_hbm, out_ref, buf, sems):
    i = pl.program_id(0)
    group = buf.shape[0]
    for g in range(group):                       # static unroll
        row = ids_ref[i * group + g]
        pltpu.make_async_copy(src_hbm.at[pl.ds(row, 1), :],
                              buf.at[pl.ds(g, 1), :],
                              sems.at[g]).start()
    for g in range(group):
        pltpu.make_async_copy(src_hbm.at[pl.ds(0, 1), :],
                              buf.at[pl.ds(g, 1), :],
                              sems.at[g]).wait()
    out_ref[...] = buf[...]


def gather_rows(x, node_ids, *, group=_GATHER_GROUP):
    num_ids = node_ids.shape[0]
    _, D = x.shape
    pad = (-num_ids) % group
    ids = node_ids
    if pad:
        ids = jnp.concatenate([node_ids, jnp.zeros((pad,), node_ids.dtype)])
    n_groups = ids.shape[0] // group
    out = pl.pallas_call(
        gather_kernel,
        out_shape=jax.ShapeDtypeStruct((n_groups * group, D), x.dtype),
        grid_spec=pltpu.PrefetchScalarGridSpec(
            num_scalar_prefetch=1,
            grid=(n_groups,),
            in_specs=[pl.BlockSpec(memory_space=pl.ANY)],
            out_specs=pl.BlockSpec((group, D), lambda i, ids: (i, 0)),
            scratch_shapes=[pltpu.VMEM((group, D), x.dtype),
                            pltpu.SemaphoreType.DMA((group,))],
        ),
        compiler_params=pltpu.CompilerParams(
            dimension_semantics=("arbitrary",)),
    )(ids, x)
    return out[:num_ids] if pad else out


# ----------------------------------------------------------------------------
# GraphClassifierWhole forward:  graph_update (RGCN) then mlp_update (gather).
# ----------------------------------------------------------------------------
def graph_classifier_whole_forward(data, params):
    g, node_ids = data
    A01 = g["adj"]                        # (R, N, N) 0/1 adjacency (edge j->i)
    H = g["feat"].astype(jnp.float32)     # (N, inp_dim)
    R, N, _ = A01.shape

    # exact f32 in-degree normalization c_{i,r}; adjacency stays exact 0/1 int8
    deg = A01.sum(axis=2, keepdims=True)
    deg_inv = (1.0 / jnp.maximum(deg, 1.0)).astype(jnp.float32)   # (R, N, 1)
    A_i8 = A01.astype(jnp.int8)
    # TODO(synk): for production, store the adjacency pre-padded in int8 (or a
    # sparse/paged layout for very large graphs) to avoid this one-time pass.

    # pad node count to a multiple of 128 (lane dim of the A stream); padded
    # rows/cols are zero so they never influence real nodes.
    n_pad = ((N + 127) // 128) * 128
    pad = n_pad - N
    if pad:
        A_i8 = jnp.pad(A_i8, ((0, 0), (0, pad), (0, pad)))
        deg_inv = jnp.pad(deg_inv, ((0, 0), (0, pad), (0, 0)),
                          constant_values=1.0)
        H = jnp.pad(H, ((0, pad), (0, 0)))

    d_out_max = max(layer["w_self"].shape[1] for layer in params["layers"])
    tile_n, tile_k = _pick_tiles(n_pad, d_out_max)

    gathered = []
    for layer in params["layers"]:
        D_in = H.shape[1]
        D_out = layer["w_self"].shape[1]

        # basis-decomposition expansion + weight stacking (tiny parameter glue)
        #   W_cat = [ W_self | W_1 | ... | W_R ]  -> (D_in, (R+1)*D_out)
        W_rel = jnp.einsum("rb,bio->rio", layer["comp"], layer["bases"])
        W_cat = jnp.concatenate(
            [layer["w_self"],
             W_rel.transpose(1, 0, 2).reshape(D_in, R * D_out)],
            axis=1).astype(jnp.bfloat16)

        # 1) one wide lane-dense matmul; S (f32) and M (bf16) split on-chip
        S, M = rgcn_transform(H, W_cat, num_rels=R, d_out=D_out, tile_n=tile_n)

        # 2) relation aggregation: int8 A stream, f32 deg scale, K-tiled
        H = rgcn_aggregate(A_i8, M, S, layer["bias"], deg_inv,
                           tile_n=tile_n, tile_k=tile_k)

        # 3) gather only the queried rows of this layer's output
        gathered.append(gather_rows(H, node_ids))

    # g.ndata['repr'][node_ids] == concat over layers of the per-layer gathers
    return jnp.concatenate(gathered, axis=1)
    # TODO(synk): the attention-weighted RGCN variant (has_attn) would need an
    # extra edge-score kernel; not present in the shown module snippet.


# ----------------------------------------------------------------------------
# References for correctness checking.
# ----------------------------------------------------------------------------
def forward_ref(data, params):
    """Pure-JAX reference with the SAME mixed precision as the Pallas path."""
    g, node_ids = data
    A01 = g["adj"]
    deg = A01.sum(axis=2, keepdims=True)
    dinv = 1.0 / jnp.maximum(deg, 1.0)
    Ab = A01.astype(jnp.bfloat16)                      # 0/1 -> exact in bf16
    H = g["feat"]
    outs = []
    for layer in params["layers"]:
        W_rel = jnp.einsum("rb,bio->rio", layer["comp"], layer["bases"])
        Hc = H.astype(jnp.bfloat16)
        S = jnp.dot(Hc, layer["w_self"].astype(jnp.bfloat16),
                    preferred_element_type=jnp.float32)
        M = jnp.einsum("nd,rdo->rno", Hc, W_rel.astype(jnp.bfloat16),
                       preferred_element_type=jnp.float32).astype(jnp.bfloat16)
        rel = (dinv * jnp.einsum("rij,rjo->rio", Ab, M,
                                 preferred_element_type=jnp.float32)).sum(0)
        H = jnp.maximum(S + layer["bias"] + rel, 0.0)
        outs.append(H)
    return jnp.concatenate(outs, axis=1)[node_ids]


def forward_ref_f32(data, params):
    """Full-f32 reference (loose sanity check for the bf16 operand path)."""
    g, node_ids = data
    A01 = g["adj"]
    deg = A01.sum(axis=2, keepdims=True)
    dinv = 1.0 / jnp.maximum(deg, 1.0)
    H = g["feat"]
    outs = []
    for layer in params["layers"]:
        W_rel = jnp.einsum("rb,bio->rio", layer["comp"], layer["bases"])
        msg = jnp.einsum("nd,rdo->rno", H, W_rel)
        rel = (dinv * jnp.einsum("rij,rjo->rio", A01, msg)).sum(axis=0)
        H = jnp.maximum(H @ layer["w_self"] + layer["bias"] + rel, 0.0)
        outs.append(H)
    return jnp.concatenate(outs, axis=1)[node_ids]


if __name__ == "__main__":
    # small, deterministic problem
    N = 32           # nodes in the (sub)graph
    R = 4            # num_rels
    B = 2            # num_bases
    INP = 32         # inp_dim
    EMB = 32         # emb_dim
    L = 2            # num_gcn_layers
    NUM_IDS = 8      # nodes queried in mlp_update

    key = jax.random.PRNGKey(0)
    keys = jax.random.split(key, 4 + 4 * L)

    # dense per-relation 0/1 adjacency (edge j -> i); normalization by
    # in-degree is derived inside the forward (exact f32).
    a01 = (jax.random.uniform(keys[0], (R, N, N)) < 0.15).astype(jnp.float32)

    feat = jax.random.normal(keys[1], (N, INP), dtype=jnp.float32)
    node_ids = jax.random.randint(keys[2], (NUM_IDS,), 0, N, dtype=jnp.int32)

    layers = []
    d_in = INP
    for l in range(L):
        kb, kc, kw, kbi = keys[4 + 4 * l: 8 + 4 * l]
        layers.append({
            "bases": 0.1 * jax.random.normal(kb, (B, d_in, EMB), jnp.float32),
            "comp": jax.random.normal(kc, (R, B), jnp.float32),
            "w_self": 0.1 * jax.random.normal(kw, (d_in, EMB), jnp.float32),
            "bias": 0.1 * jax.random.normal(kbi, (1, EMB), jnp.float32),
        })
        d_in = EMB
    params = {"layers": layers}

    g = {"adj": a01, "feat": feat}
    data = (g, node_ids)

    out = graph_classifier_whole_forward(data, params)
    out = jax.block_until_ready(out)

    assert out.shape == (NUM_IDS, L * EMB), out.shape

    # tight check against the mixed-precision-matched reference
    ref_m = forward_ref(data, params)
    err_m = float(jnp.max(jnp.abs(out - ref_m)))
    assert jnp.allclose(out, ref_m, atol=5e-3, rtol=5e-3), err_m

    # loose sanity check against the full-f32 reference (bf16 operand error)
    ref_f = forward_ref_f32(data, params)
    err_f = float(jnp.max(jnp.abs(out - ref_f)))
    assert jnp.allclose(out, ref_f, atol=1e-1, rtol=1e-1), err_f

    print("KERNEL_OK")
</pallas_src>

<mosaic_0001>
module attributes {stable_mosaic.version = 11 : i64} {
  func.func @rgcn_transform_kernel(%arg0: i32, %arg1: memref<128x32xf32, #tpu.memory_space<vmem>>, %arg2: memref<32x160xbf16, #tpu.memory_space<vmem>>, %arg3: memref<128x32xf32, #tpu.memory_space<vmem>>, %arg4: memref<4x128x32xbf16, #tpu.memory_space<vmem>>) attributes {dimension_semantics = [#tpu.dimension_semantics<parallel>], iteration_bounds = array<i64: 1>, scalar_prefetch = 0 : i64, scratch_operands = 0 : i64, tpu.core_type = #tpu.core_type<tc>, window_params = [{transform_indices = @transform_0, window_bounds = array<i64: 128, 32>}, {pipeline_mode = #tpu.pipeline_mode<synchronous>, transform_indices = @transform_1, window_bounds = array<i64: 32, 160>}, {transform_indices = @transform_2, window_bounds = array<i64: 128, 32>}, {transform_indices = @transform_3, window_bounds = array<i64: 4, 128, 32>}]} {
    %c0 = arith.constant 0 : index
    %c0_0 = arith.constant 0 : index
    %0 = vector.load %arg1[%c0, %c0_0] : memref<128x32xf32, #tpu.memory_space<vmem>>, vector<128x32xf32>
    %1 = arith.truncf %0 : vector<128x32xf32> to vector<128x32xbf16>
    %c0_1 = arith.constant 0 : index
    %c0_2 = arith.constant 0 : index
    %2 = vector.load %arg2[%c0_1, %c0_2] : memref<32x160xbf16, #tpu.memory_space<vmem>>, vector<32x160xbf16>
    %cst = arith.constant dense<0.000000e+00> : vector<128x160xf32>
    %3 = tpu.matmul %1, %2, %cst {dimension_numbers = #tpu.dot_dimension_numbers<[1], [0], [0], [1], [0, 0, 1, 1], [], []>} : vector<128x32xbf16>, vector<32x160xbf16>, vector<128x160xf32> -> vector<128x160xf32>
    %4 = vector.extract_strided_slice %3 {offsets = [0, 0], sizes = [128, 32], strides = [1, 1]} : vector<128x160xf32> to vector<128x32xf32>
    %c0_3 = arith.constant 0 : index
    %c0_4 = arith.constant 0 : index
    %5 = vector.load %arg3[%c0_3, %c0_4] : memref<128x32xf32, #tpu.memory_space<vmem>>, vector<128x32xf32>
    tpu.vector_store %arg3[%c0_3, %c0_4], %4 {strides = array<i32>} : memref<128x32xf32, #tpu.memory_space<vmem>>, vector<128x32xf32>,
    %6 = vector.extract_strided_slice %3 {offsets = [0, 32], sizes = [128, 32], strides = [1, 1]} : vector<128x160xf32> to vector<128x32xf32>
    %7 = arith.truncf %6 : vector<128x32xf32> to vector<128x32xbf16>
    %c0_5 = arith.constant 0 : index
    %c0_6 = arith.constant 0 : index
    %c0_7 = arith.constant 0 : index
    %8 = vector.load %arg4[%c0_5, %c0_6, %c0_7] : memref<4x128x32xbf16, #tpu.memory_space<vmem>>, vector<1x128x32xbf16>
    %9 = vector.shape_cast %8 : vector<1x128x32xbf16> to vector<128x32xbf16>
    %10 = vector.shape_cast %7 : vector<128x32xbf16> to vector<1x128x32xbf16>
    tpu.vector_store %arg4[%c0_5, %c0_6, %c0_7], %10 {strides = array<i32>} : memref<4x128x32xbf16, #tpu.memory_space<vmem>>, vector<1x128x32xbf16>,
    %11 = vector.extract_strided_slice %3 {offsets = [0, 64], sizes = [128, 32], strides = [1, 1]} : vector<128x160xf32> to vector<128x32xf32>
    %12 = arith.truncf %11 : vector<128x32xf32> to vector<128x32xbf16>
    %c1 = arith.constant 1 : index
    %c0_8 = arith.constant 0 : index
    %c0_9 = arith.constant 0 : index
    %13 = vector.load %arg4[%c1, %c0_8, %c0_9] : memref<4x128x32xbf16, #tpu.memory_space<vmem>>, vector<1x128x32xbf16>
    %14 = vector.shape_cast %13 : vector<1x128x32xbf16> to vector<128x32xbf16>
    %15 = vector.shape_cast %12 : vector<128x32xbf16> to vector<1x128x32xbf16>
    tpu.vector_store %arg4[%c1, %c0_8, %c0_9], %15 {strides = array<i32>} : memref<4x128x32xbf16, #tpu.memory_space<vmem>>, vector<1x128x32xbf16>,
    %16 = vector.extract_strided_slice %3 {offsets = [0, 96], sizes = [128, 32], strides = [1, 1]} : vector<128x160xf32> to vector<128x32xf32>
    %17 = arith.truncf %16 : vector<128x32xf32> to vector<128x32xbf16>
    %c2 = arith.constant 2 : index
    %c0_10 = arith.constant 0 : index
    %c0_11 = arith.constant 0 : index
    %18 = vector.load %arg4[%c2, %c0_10, %c0_11] : memref<4x128x32xbf16, #tpu.memory_space<vmem>>, vector<1x128x32xbf16>
    %19 = vector.shape_cast %18 : vector<1x128x32xbf16> to vector<128x32xbf16>
    %20 = vector.shape_cast %17 : vector<128x32xbf16> to vector<1x128x32xbf16>
    tpu.vector_store %arg4[%c2, %c0_10, %c0_11], %20 {strides = array<i32>} : memref<4x128x32xbf16, #tpu.memory_space<vmem>>, vector<1x128x32xbf16>,
    %21 = vector.extract_strided_slice %3 {offsets = [0, 128], sizes = [128, 32], strides = [1, 1]} : vector<128x160xf32> to vector<128x32xf32>
    %22 = arith.truncf %21 : vector<128x32xf32> to vector<128x32xbf16>
    %c3 = arith.constant 3 : index
    %c0_12 = arith.constant 0 : index
    %c0_13 = arith.constant 0 : index
    %23 = vector.load %arg4[%c3, %c0_12, %c0_13] : memref<4x128x32xbf16, #tpu.memory_space<vmem>>, vector<1x128x32xbf16>
    %24 = vector.shape_cast %23 : vector<1x128x32xbf16> to vector<128x32xbf16>
    %25 = vector.shape_cast %22 : vector<128x32xbf16> to vector<1x128x32xbf16>
    tpu.vector_store %arg4[%c3, %c0_12, %c0_13], %25 {strides = array<i32>} : memref<4x128x32xbf16, #tpu.memory_space<vmem>>, vector<1x128x32xbf16>,
    return
  }
  func.func @transform_0(%arg0: i32) -> (i32, i32) {
    %c0_i32 = arith.constant 0 : i32
    %c0_i32_0 = arith.constant 0 : i32
    return %arg0, %c0_i32 : i32, i32
  }
  func.func @transform_1(%arg0: i32) -> (i32, i32) {
    %c0_i32 = arith.constant 0 : i32
    %c0_i32_0 = arith.constant 0 : i32
    %c0_i32_1 = arith.constant 0 : i32
    return %c0_i32, %c0_i32_0 : i32, i32
  }
  func.func @transform_2(%arg0: i32) -> (i32, i32) {
    %c0_i32 = arith.constant 0 : i32
    %c0_i32_0 = arith.constant 0 : i32
    return %arg0, %c0_i32 : i32, i32
  }
  func.func @transform_3(%arg0: i32) -> (i32, i32, i32) {
    %c0_i32 = arith.constant 0 : i32
    %c0_i32_0 = arith.constant 0 : i32
    %c0_i32_1 = arith.constant 0 : i32
    return %c0_i32, %arg0, %c0_i32_0 : i32, i32, i32
  }
}

</mosaic_0001>

<llo_original>
// kernel: tpu_custom_call.1
$region0: #{tpu_custom_call.1}
  #allocation0 [shape = 'u32[]', space=smem, size = 0x4, offset = 0x4, fixed_abs, tag = 'smem constant byte address 0x4 - core index']
  #allocation1 [shape = 'u32[72,128]{1,0:T(1,128)}', space=vmem, size = 0x9000, scoped, tag = 'internal scratch']
  %s0 = inlined_call_operand.vmem [shape: f32[128,32], index: 0, kind: input, shape index: {}]
  %s1 = inlined_call_operand.vmem [shape: bf16[32,160], index: 1, kind: input, shape index: {}]
  %s2 = inlined_call_operand.vmem [shape: f32[128,32], index: 2, kind: output, shape index: {0}]
  %s3 = inlined_call_operand.vmem [shape: bf16[4,128,32], index: 3, kind: output, shape index: {1}]
  %4 = xla_tuple %s2, %s3
  %s5 = sld [smem:[#allocation0]]
  $region26: #{tpu_custom_call.1} parent=0
    _
  %s7 = ssub.s32 1, %s5
  %s8 = scalar_select 0, %s7, %s5
  // Predicated region
  $region2: #{tpu_custom_call.1} parent=0 // pred_check
    _
  $region3: #{tpu_custom_call.1} parent=0 // pred_check_branch
    %10 = sbr.rel (0) target = $region5
  $region4: #{tpu_custom_call.1} parent=0 // pred_region
    _
  $region5: #{tpu_custom_call.1} parent=0 // pred_fallthru
    _
  // Predicated region
  $region6: #{tpu_custom_call.1} parent=0 // pred_check
    _
  $region7: #{tpu_custom_call.1} parent=0 // pred_check_branch
    %12 = sbr.rel (0) target = $region9
  $region8: #{tpu_custom_call.1} parent=0 // pred_region
    _
  $region9: #{tpu_custom_call.1} parent=0 // pred_fallthru
    _
  %v14 = vld [vmem:[%s0] sm:$0xff]
  %v15 = vld [vmem:[%s0 + $0x8] sm:$0xff]
  %v16 = vld [vmem:[%s0 + $0x10] sm:$0xff]
  %v17 = vld [vmem:[%s0 + $0x18] sm:$0xff]
  %v18 = vld [vmem:[%s0 + $0x20] sm:$0xff]
  %v19 = vld [vmem:[%s0 + $0x28] sm:$0xff]
  %v20 = vld [vmem:[%s0 + $0x30] sm:$0xff]
  %v21 = vld [vmem:[%s0 + $0x38] sm:$0xff]
  %v22 = vld [vmem:[%s0 + $0x40] sm:$0xff]
  %v23 = vld [vmem:[%s0 + $0x48] sm:$0xff]
  %v24 = vld [vmem:[%s0 + $0x50] sm:$0xff]
  %v25 = vld [vmem:[%s0 + $0x58] sm:$0xff]
  %v26 = vld [vmem:[%s0 + $0x60] sm:$0xff]
  %v27 = vld [vmem:[%s0 + $0x68] sm:$0xff]
  %v28 = vld [vmem:[%s0 + $0x70] sm:$0xff]
  %v29 = vld [vmem:[%s0 + $0x78] sm:$0xff]
  %v30 = vpack.c.bf16 %v15, %v14
  %v31 = vpack.c.bf16 %v17, %v16
  %v32 = vpack.c.bf16 %v19, %v18
  %v33 = vpack.c.bf16 %v21, %v20
  %v34 = vpack.c.bf16 %v23, %v22
  %v35 = vpack.c.bf16 %v25, %v24
  %v36 = vpack.c.bf16 %v27, %v26
  %v37 = vpack.c.bf16 %v29, %v28
  %v38 = vld [vmem:[%s1] sm:$0xff]
  %v39 = vld [vmem:[%s1 + $0x8] sm:$0xff]
  %v40 = vld [vmem:[%s1 + $0x10] sm:$0xff]
  %v41 = vld [vmem:[%s1 + $0x18] sm:$0xff]
  %v46 = vunpack.c.l.b16 %v38
  %v47 = vunpack.c.h.b16 %v38
  %v48 = vunpack.c.l.b16 %v39
  %v49 = vunpack.c.h.b16 %v39
  %v50 = vunpack.c.l.b16 %v40
  %v51 = vunpack.c.h.b16 %v40
  %v52 = vunpack.c.l.b16 %v41
  %v53 = vunpack.c.h.b16 %v41
  %v54 = vpack.c.b16 %v48, %v46
  %v55 = vpack.c.b16 %v49, %v47
  %v56 = vpack.c.b16 %v52, %v50
  %v57 = vpack.c.b16 %v53, %v51
  %vm62 = vcmask 261120
  %v64 = vsel %vm62, %v30, 0
  %v67 = vsel %vm62, %v31, 0
  %v70 = vsel %vm62, %v32, 0
  %v73 = vsel %vm62, %v33, 0
  %v76 = vsel %vm62, %v34, 0
  %v79 = vsel %vm62, %v35, 0
  %v82 = vsel %vm62, %v36, 0
  %v85 = vsel %vm62, %v37, 0
  %87 = vmatpush.bf16.msra.mxu0 0
  %88 = vmatpush.bf16.msra.mxu0 0
  %89 = vmatpush.bf16.msra.mxu0 0
  %90 = vmatpush.bf16.msra.mxu0 0
  %91 = vmatpush.bf16.msra.mxu0 0
  %92 = vmatpush.bf16.msra.mxu0 0
  %93 = vmatpush.bf16.msra.mxu0 %v56
  %94 = vmatpush.bf16.msra.mxu0 %v54
  %95 = vmatmul.bf16.gmra.mxu0 %v64
  %v96 = vpop.f32.mrf.mxu0
  %v97 = vadd.f32 0.0, %v96
  %v98 = vpop.f32.mrf.mxu0
  %v99 = vadd.f32 0.0, %v98
  %100 = vmatmul.bf16.gmra.mxu0 %v67
  %v101 = vpop.f32.mrf.mxu0
  %v102 = vadd.f32 0.0, %v101
  %v103 = vpop.f32.mrf.mxu0
  %v104 = vadd.f32 0.0, %v103
  %105 = vmatmul.bf16.gmra.mxu0 %v70
  %v106 = vpop.f32.mrf.mxu0
  %v107 = vadd.f32 0.0, %v106
  %v108 = vpop.f32.mrf.mxu0
  %v109 = vadd.f32 0.0, %v108
  %110 = vmatmul.bf16.gmra.mxu0 %v73
  %v111 = vpop.f32.mrf.mxu0
  %v112 = vadd.f32 0.0, %v111
  %v113 = vpop.f32.mrf.mxu0
  %v114 = vadd.f32 0.0, %v113
  %115 = vmatmul.bf16.gmra.mxu0 %v76
  %v116 = vpop.f32.mrf.mxu0
  %v117 = vadd.f32 0.0, %v116
  %v118 = vpop.f32.mrf.mxu0
  %v119 = vadd.f32 0.0, %v118
  %120 = vmatmul.bf16.gmra.mxu0 %v79
  %v121 = vpop.f32.mrf.mxu0
  %v122 = vadd.f32 0.0, %v121
  %v123 = vpop.f32.mrf.mxu0
  %v124 = vadd.f32 0.0, %v123
  %125 = vmatmul.bf16.gmra.mxu0 %v82
  %v126 = vpop.f32.mrf.mxu0
  %v127 = vadd.f32 0.0, %v126
  %v128 = vpop.f32.mrf.mxu0
  %v129 = vadd.f32 0.0, %v128
  %130 = vmatmul.bf16.gmra.mxu0 %v85
  %v131 = vpop.f32.mrf.mxu0
  %v132 = vadd.f32 0.0, %v131
  %v133 = vpop.f32.mrf.mxu0
  %v134 = vadd.f32 0.0, %v133
  %135 = vdwg.mxu0
  %136 = vmatpush.bf16.msra.mxu0 0
  %137 = vmatpush.bf16.msra.mxu0 0
  %138 = vmatpush.bf16.msra.mxu0 0
  %139 = vmatpush.bf16.msra.mxu0 0
  %140 = vmatpush.bf16.msra.mxu0 0
  %141 = vmatpush.bf16.msra.mxu0 0
  %142 = vmatpush.bf16.msra.mxu0 %v57
  %143 = vmatpush.bf16.msra.mxu0 %v55
  %144 = vmatmul.bf16.gmra.mxu0 %v64
  %v145 = vpop.f32.mrf.mxu0
  %v146 = vadd.f32 0.0, %v145
  %v147 = vpop.f32.mrf.mxu0
  %v148 = vadd.f32 0.0, %v147
  %149 = vmatmul.bf16.gmra.mxu0 %v67
  %v150 = vpop.f32.mrf.mxu0
  %v151 = vadd.f32 0.0, %v150
  %v152 = vpop.f32.mrf.mxu0
  %v153 = vadd.f32 0.0, %v152
  %154 = vmatmul.bf16.gmra.mxu0 %v70
  %v155 = vpop.f32.mrf.mxu0
  %v156 = vadd.f32 0.0, %v155
  %v157 = vpop.f32.mrf.mxu0
  %v158 = vadd.f32 0.0, %v157
  %159 = vmatmul.bf16.gmra.mxu0 %v73
  %v160 = vpop.f32.mrf.mxu0
  %v161 = vadd.f32 0.0, %v160
  %v162 = vpop.f32.mrf.mxu0
  %v163 = vadd.f32 0.0, %v162
  %164 = vmatmul.bf16.gmra.mxu0 %v76
  %v165 = vpop.f32.mrf.mxu0
  %v166 = vadd.f32 0.0, %v165
  %v167 = vpop.f32.mrf.mxu0
  %v168 = vadd.f32 0.0, %v167
  %169 = vmatmul.bf16.gmra.mxu0 %v79
  %v170 = vpop.f32.mrf.mxu0
  %v171 = vadd.f32 0.0, %v170
  %v172 = vpop.f32.mrf.mxu0
  %v173 = vadd.f32 0.0, %v172
  %174 = vmatmul.bf16.gmra.mxu0 %v82
  %v175 = vpop.f32.mrf.mxu0
  %v176 = vadd.f32 0.0, %v175
  %v177 = vpop.f32.mrf.mxu0
  %v178 = vadd.f32 0.0, %v177
  %179 = vmatmul.bf16.gmra.mxu0 %v85
  %v180 = vpop.f32.mrf.mxu0
  %v181 = vadd.f32 0.0, %v180
  %v182 = vpop.f32.mrf.mxu0
  %v183 = vadd.f32 0.0, %v182
  %184 = vdwg.mxu0
  %185 = vst.msk [vmem:[%s2] sm:$0xff] %vm62, %v97
  %186 = vst.msk [vmem:[%s2 + $0x8] sm:$0xff] %vm62, %v99
  %187 = vst.msk [vmem:[%s2 + $0x10] sm:$0xff] %vm62, %v102
  %188 = vst.msk [vmem:[%s2 + $0x18] sm:$0xff] %vm62, %v104
  %189 = vst.msk [vmem:[%s2 + $0x20] sm:$0xff] %vm62, %v107
  %190 = vst.msk [vmem:[%s2 + $0x28] sm:$0xff] %vm62, %v109
  %191 = vst.msk [vmem:[%s2 + $0x30] sm:$0xff] %vm62, %v112
  %192 = vst.msk [vmem:[%s2 + $0x38] sm:$0xff] %vm62, %v114
  %193 = vst.msk [vmem:[%s2 + $0x40] sm:$0xff] %vm62, %v117
  %194 = vst.msk [vmem:[%s2 + $0x48] sm:$0xff] %vm62, %v119
  %195 = vst.msk [vmem:[%s2 + $0x50] sm:$0xff] %vm62, %v122
  %196 = vst.msk [vmem:[%s2 + $0x58] sm:$0xff] %vm62, %v124
  %197 = vst.msk [vmem:[%s2 + $0x60] sm:$0xff] %vm62, %v127
  %198 = vst.msk [vmem:[%s2 + $0x68] sm:$0xff] %vm62, %v129
  %199 = vst.msk [vmem:[%s2 + $0x70] sm:$0xff] %vm62, %v132
  %200 = vst.msk [vmem:[%s2 + $0x78] sm:$0xff] %vm62, %v134
  %v201 = vpack.c.bf16 %v97, %v97
  %v202 = vpack.c.bf16 %v99, %v99
  %v203 = vpack.c.bf16 %v102, %v102
  %v204 = vpack.c.bf16 %v104, %v104
  %v205 = vpack.c.bf16 %v107, %v107
  %v206 = vpack.c.bf16 %v109, %v109
  %v207 = vpack.c.bf16 %v112, %v112
  %v208 = vpack.c.bf16 %v114, %v114
  %v209 = vpack.c.bf16 %v117, %v117
  %v210 = vpack.c.bf16 %v119, %v119
  %v211 = vpack.c.bf16 %v122, %v122
  %v212 = vpack.c.bf16 %v124, %v124
  %v213 = vpack.c.bf16 %v127, %v127
  %v214 = vpack.c.bf16 %v129, %v129
  %v215 = vpack.c.bf16 %v132, %v132
  %v216 = vpack.c.bf16 %v134, %v134
  %233 = vrot.lane.b32.xlu0 %v201, 96
  %v234 = vpop.permute.xlu0 %233
  %235 = vrot.lane.b32.xlu0 %v202, 96
  %v236 = vpop.permute.xlu0 %235
  %237 = vrot.lane.b32.xlu0 %v203, 96
  %v238 = vpop.permute.xlu0 %237
  %239 = vrot.lane.b32.xlu0 %v204, 96
  %v240 = vpop.permute.xlu0 %239
  %241 = vrot.lane.b32.xlu0 %v205, 96
  %v242 = vpop.permute.xlu0 %241
  %243 = vrot.lane.b32.xlu0 %v206, 96
  %v244 = vpop.permute.xlu0 %243
  %245 = vrot.lane.b32.xlu0 %v207, 96
  %v246 = vpop.permute.xlu0 %245
  %247 = vrot.lane.b32.xlu0 %v208, 96
  %v248 = vpop.permute.xlu0 %247
  %249 = vrot.lane.b32.xlu0 %v209, 96
  %v250 = vpop.permute.xlu0 %249
  %251 = vrot.lane.b32.xlu0 %v210, 96
  %v252 = vpop.permute.xlu0 %251
  %253 = vrot.lane.b32.xlu0 %v211, 96
  %v254 = vpop.permute.xlu0 %253
  %255 = vrot.lane.b32.xlu0 %v212, 96
  %v256 = vpop.permute.xlu0 %255
  %257 = vrot.lane.b32.xlu0 %v213, 96
  %v258 = vpop.permute.xlu0 %257
  %259 = vrot.lane.b32.xlu0 %v214, 96
  %v260 = vpop.permute.xlu0 %259
  %261 = vrot.lane.b32.xlu0 %v215, 96
  %v262 = vpop.permute.xlu0 %261
  %263 = vrot.lane.b32.xlu0 %v216, 96
  %v264 = vpop.permute.xlu0 %263
  %vm281 = vcmask 257024
  %282 = vst.msk [vmem:[%s3] sm:$0xf] %vm281, %v234
  %283 = vst.msk [vmem:[%s3 + $0x4] sm:$0xf] %vm281, %v236
  %284 = vst.msk [vmem:[%s3 + $0x8] sm:$0xf] %vm281, %v238
  %285 = vst.msk [vmem:[%s3 + $0xc] sm:$0xf] %vm281, %v240
  %286 = vst.msk [vmem:[%s3 + $0x10] sm:$0xf] %vm281, %v242
  %287 = vst.msk [vmem:[%s3 + $0x14] sm:$0xf] %vm281, %v244
  %288 = vst.msk [vmem:[%s3 + $0x18] sm:$0xf] %vm281, %v246
  %289 = vst.msk [vmem:[%s3 + $0x1c] sm:$0xf] %vm281, %v248
  %290 = vst.msk [vmem:[%s3 + $0x20] sm:$0xf] %vm281, %v250
  %291 = vst.msk [vmem:[%s3 + $0x24] sm:$0xf] %vm281, %v252
  %292 = vst.msk [vmem:[%s3 + $0x28] sm:$0xf] %vm281, %v254
  %293 = vst.msk [vmem:[%s3 + $0x2c] sm:$0xf] %vm281, %v256
  %294 = vst.msk [vmem:[%s3 + $0x30] sm:$0xf] %vm281, %v258
  %295 = vst.msk [vmem:[%s3 + $0x34] sm:$0xf] %vm281, %v260
  %296 = vst.msk [vmem:[%s3 + $0x38] sm:$0xf] %vm281, %v262
  %297 = vst.msk [vmem:[%s3 + $0x3c] sm:$0xf] %vm281, %v264
  %298 = vrot.lane.b32.xlu0 %v201, 64
  %v299 = vpop.permute.xlu0 %298
  %300 = vrot.lane.b32.xlu0 %v202, 64
  %v301 = vpop.permute.xlu0 %300
  %302 = vrot.lane.b32.xlu0 %v203, 64
  %v303 = vpop.permute.xlu0 %302
  %304 = vrot.lane.b32.xlu0 %v204, 64
  %v305 = vpop.permute.xlu0 %304
  %306 = vrot.lane.b32.xlu0 %v205, 64
  %v307 = vpop.permute.xlu0 %306
  %308 = vrot.lane.b32.xlu0 %v206, 64
  %v309 = vpop.permute.xlu0 %308
  %310 = vrot.lane.b32.xlu0 %v207, 64
  %v311 = vpop.permute.xlu0 %310
  %312 = vrot.lane.b32.xlu0 %v208, 64
  %v313 = vpop.permute.xlu0 %312
  %314 = vrot.lane.b32.xlu0 %v209, 64
  %v315 = vpop.permute.xlu0 %314
  %316 = vrot.lane.b32.xlu0 %v210, 64
  %v317 = vpop.permute.xlu0 %316
  %318 = vrot.lane.b32.xlu0 %v211, 64
  %v319 = vpop.permute.xlu0 %318
  %320 = vrot.lane.b32.xlu0 %v212, 64
  %v321 = vpop.permute.xlu0 %320
  %322 = vrot.lane.b32.xlu0 %v213, 64
  %v323 = vpop.permute.xlu0 %322
  %324 = vrot.lane.b32.xlu0 %v214, 64
  %v325 = vpop.permute.xlu0 %324
  %326 = vrot.lane.b32.xlu0 %v215, 64
  %v327 = vpop.permute.xlu0 %326
  %328 = vrot.lane.b32.xlu0 %v216, 64
  %v329 = vpop.permute.xlu0 %328
  %s346 = scalar_lea.vmem %s3, 64
  %347 = vst.msk [vmem:[%s346] sm:$0xf] %vm281, %v299
  %348 = vst.msk [vmem:[%s346 + $0x4] sm:$0xf] %vm281, %v301
  %349 = vst.msk [vmem:[%s346 + $0x8] sm:$0xf] %vm281, %v303
  %350 = vst.msk [vmem:[%s346 + $0xc] sm:$0xf] %vm281, %v305
  %351 = vst.msk [vmem:[%s346 + $0x10] sm:$0xf] %vm281, %v307
  %352 = vst.msk [vmem:[%s346 + $0x14] sm:$0xf] %vm281, %v309
  %353 = vst.msk [vmem:[%s346 + $0x18] sm:$0xf] %vm281, %v311
  %354 = vst.msk [vmem:[%s346 + $0x1c] sm:$0xf] %vm281, %v313
  %355 = vst.msk [vmem:[%s346 + $0x20] sm:$0xf] %vm281, %v315
  %356 = vst.msk [vmem:[%s346 + $0x24] sm:$0xf] %vm281, %v317
  %357 = vst.msk [vmem:[%s346 + $0x28] sm:$0xf] %vm281, %v319
  %358 = vst.msk [vmem:[%s346 + $0x2c] sm:$0xf] %vm281, %v321
  %359 = vst.msk [vmem:[%s346 + $0x30] sm:$0xf] %vm281, %v323
  %360 = vst.msk [vmem:[%s346 + $0x34] sm:$0xf] %vm281, %v325
  %361 = vst.msk [vmem:[%s346 + $0x38] sm:$0xf] %vm281, %v327
  %362 = vst.msk [vmem:[%s346 + $0x3c] sm:$0xf] %vm281, %v329
  %363 = vrot.lane.b32.xlu0 %v201, 32
  %v364 = vpop.permute.xlu0 %363
  %365 = vrot.lane.b32.xlu0 %v202, 32
  %v366 = vpop.permute.xlu0 %365
  %367 = vrot.lane.b32.xlu0 %v203, 32
  %v368 = vpop.permute.xlu0 %367
  %369 = vrot.lane.b32.xlu0 %v204, 32
  %v370 = vpop.permute.xlu0 %369
  %371 = vrot.lane.b32.xlu0 %v205, 32
  %v372 = vpop.permute.xlu0 %371
  %373 = vrot.lane.b32.xlu0 %v206, 32
  %v374 = vpop.permute.xlu0 %373
  %375 = vrot.lane.b32.xlu0 %v207, 32
  %v376 = vpop.permute.xlu0 %375
  %377 = vrot.lane.b32.xlu0 %v208, 32
  %v378 = vpop.permute.xlu0 %377
  %379 = vrot.lane.b32.xlu0 %v209, 32
  %v380 = vpop.permute.xlu0 %379
  %381 = vrot.lane.b32.xlu0 %v210, 32
  %v382 = vpop.permute.xlu0 %381
  %383 = vrot.lane.b32.xlu0 %v211, 32
  %v384 = vpop.permute.xlu0 %383
  %385 = vrot.lane.b32.xlu0 %v212, 32
  %v386 = vpop.permute.xlu0 %385
  %387 = vrot.lane.b32.xlu0 %v213, 32
  %v388 = vpop.permute.xlu0 %387
  %389 = vrot.lane.b32.xlu0 %v214, 32
  %v390 = vpop.permute.xlu0 %389
  %391 = vrot.lane.b32.xlu0 %v215, 32
  %v392 = vpop.permute.xlu0 %391
  %393 = vrot.lane.b32.xlu0 %v216, 32
  %v394 = vpop.permute.xlu0 %393
  %s411 = scalar_lea.vmem %s3, 128
  %412 = vst.msk [vmem:[%s411] sm:$0xf] %vm281, %v364
  %413 = vst.msk [vmem:[%s411 + $0x4] sm:$0xf] %vm281, %v366
  %414 = vst.msk [vmem:[%s411 + $0x8] sm:$0xf] %vm281, %v368
  %415 = vst.msk [vmem:[%s411 + $0xc] sm:$0xf] %vm281, %v370
  %416 = vst.msk [vmem:[%s411 + $0x10] sm:$0xf] %vm281, %v372
  %417 = vst.msk [vmem:[%s411 + $0x14] sm:$0xf] %vm281, %v374
  %418 = vst.msk [vmem:[%s411 + $0x18] sm:$0xf] %vm281, %v376
  %419 = vst.msk [vmem:[%s411 + $0x1c] sm:$0xf] %vm281, %v378
  %420 = vst.msk [vmem:[%s411 + $0x20] sm:$0xf] %vm281, %v380
  %421 = vst.msk [vmem:[%s411 + $0x24] sm:$0xf] %vm281, %v382
  %422 = vst.msk [vmem:[%s411 + $0x28] sm:$0xf] %vm281, %v384
  %423 = vst.msk [vmem:[%s411 + $0x2c] sm:$0xf] %vm281, %v386
  %424 = vst.msk [vmem:[%s411 + $0x30] sm:$0xf] %vm281, %v388
  %425 = vst.msk [vmem:[%s411 + $0x34] sm:$0xf] %vm281, %v390
  %426 = vst.msk [vmem:[%s411 + $0x38] sm:$0xf] %vm281, %v392
  %427 = vst.msk [vmem:[%s411 + $0x3c] sm:$0xf] %vm281, %v394
  %v428 = vpack.c.bf16 %v146, %v146
  %v429 = vpack.c.bf16 %v148, %v148
  %v430 = vpack.c.bf16 %v151, %v151
  %v431 = vpack.c.bf16 %v153, %v153
  %v432 = vpack.c.bf16 %v156, %v156
  %v433 = vpack.c.bf16 %v158, %v158
  %v434 = vpack.c.bf16 %v161, %v161
  %v435 = vpack.c.bf16 %v163, %v163
  %v436 = vpack.c.bf16 %v166, %v166
  %v437 = vpack.c.bf16 %v168, %v168
  %v438 = vpack.c.bf16 %v171, %v171
  %v439 = vpack.c.bf16 %v173, %v173
  %v440 = vpack.c.bf16 %v176, %v176
  %v441 = vpack.c.bf16 %v178, %v178
  %v442 = vpack.c.bf16 %v181, %v181
  %v443 = vpack.c.bf16 %v183, %v183
  %s444 = scalar_lea.vmem %s3, 192
  %445 = vst.msk [vmem:[%s444] sm:$0xf] %vm281, %v428
  %446 = vst.msk [vmem:[%s444 + $0x4] sm:$0xf] %vm281, %v429
  %447 = vst.msk [vmem:[%s444 + $0x8] sm:$0xf] %vm281, %v430
  %448 = vst.msk [vmem:[%s444 + $0xc] sm:$0xf] %vm281, %v431
  %449 = vst.msk [vmem:[%s444 + $0x10] sm:$0xf] %vm281, %v432
  %450 = vst.msk [vmem:[%s444 + $0x14] sm:$0xf] %vm281, %v433
  %451 = vst.msk [vmem:[%s444 + $0x18] sm:$0xf] %vm281, %v434
  %452 = vst.msk [vmem:[%s444 + $0x1c] sm:$0xf] %vm281, %v435
  %453 = vst.msk [vmem:[%s444 + $0x20] sm:$0xf] %vm281, %v436
  %454 = vst.msk [vmem:[%s444 + $0x24] sm:$0xf] %vm281, %v437
  %455 = vst.msk [vmem:[%s444 + $0x28] sm:$0xf] %vm281, %v438
  %456 = vst.msk [vmem:[%s444 + $0x2c] sm:$0xf] %vm281, %v439
  %457 = vst.msk [vmem:[%s444 + $0x30] sm:$0xf] %vm281, %v440
  %458 = vst.msk [vmem:[%s444 + $0x34] sm:$0xf] %vm281, %v441
  %459 = vst.msk [vmem:[%s444 + $0x38] sm:$0xf] %vm281, %v442
  %460 = vst.msk [vmem:[%s444 + $0x3c] sm:$0xf] %vm281, %v443
  // Predicated region
  $region10: #{tpu_custom_call.1} parent=0 // pred_check
    _
  $region11: #{tpu_custom_call.1} parent=0 // pred_check_branch
    %462 = sbr.rel (0) target = $region13
  $region12: #{tpu_custom_call.1} parent=0 // pred_region
    _
  $region13: #{tpu_custom_call.1} parent=0 // pred_fallthru
    _
  // Predicated region
  $region14: #{tpu_custom_call.1} parent=0 // pred_check
    _
  $region15: #{tpu_custom_call.1} parent=0 // pred_check_branch
    %464 = sbr.rel (0) target = $region17
  $region16: #{tpu_custom_call.1} parent=0 // pred_region
    _
  $region17: #{tpu_custom_call.1} parent=0 // pred_fallthru
    _
  // Predicated region
  $region18: #{tpu_custom_call.1} parent=0 // pred_check
    _
  $region19: #{tpu_custom_call.1} parent=0 // pred_check_branch
    %466 = sbr.rel (0) target = $region21
  $region20: #{tpu_custom_call.1} parent=0 // pred_region
    _
  $region21: #{tpu_custom_call.1} parent=0 // pred_fallthru
    _
  // Predicated region
  $region22: #{tpu_custom_call.1} parent=0 // pred_check
    _
  $region23: #{tpu_custom_call.1} parent=0 // pred_check_branch
    %468 = sbr.rel (0) target = $region25
  $region24: #{tpu_custom_call.1} parent=0 // pred_region
    _
  $region25: #{tpu_custom_call.1} parent=0 // pred_fallthru
    _

</llo_original>
